<compile_context>
chip_gen: v7x
topology: tpu7x:2x2x1
jax: 0.10.0
libtpu: 0.0.40
codegen_flags: <defaults>
</compile_context>

<pallas_src>
import jax
import jax.numpy as jnp
from jax.experimental import pallas as pl
from jax.experimental.pallas import tpu as pltpu

EPS = 1e-10


def _round_up(n, m):
    return ((n + m - 1) // m) * m


def l2norm_kernel(x_ref, o_ref):
    # x_ref / o_ref: (TM, D) tile in VMEM
    x = x_ref[...].astype(jnp.float32)
    ss = jnp.sum(x * x, axis=-1, keepdims=True)      # (TM, 1) cross-lane reduce (XLU)
    inv = 1.0 / jnp.sqrt(ss + EPS)                   # per-row inverse norm (TM ops only)
    o_ref[...] = (x * inv).astype(o_ref.dtype)       # broadcast multiply, full VPU tiles


def l2norm(x, *, tm=1024):
    """Row-wise L2 normalization over the last (feature) axis.

    x: (N, D) array. Returns an array of the same shape/dtype.
    """
    N, D = x.shape

    # Clamp the row tile for small inputs (keep it a multiple of 8 for f32
    # sublane alignment), then pad N up to a multiple of the tile.
    tm_eff = min(tm, _round_up(N, 8))
    n_pad = _round_up(N, tm_eff)

    x_in = x
    if n_pad != N:
        # Zero rows are safe: norm = sqrt(0 + eps) > 0; padded rows are sliced off.
        x_in = jnp.pad(x, ((0, n_pad - N), (0, 0)))

    out = pl.pallas_call(
        l2norm_kernel,
        out_shape=jax.ShapeDtypeStruct((n_pad, D), x.dtype),
        grid_spec=pltpu.PrefetchScalarGridSpec(
            num_scalar_prefetch=0,
            grid=(n_pad // tm_eff,),
            in_specs=[pl.BlockSpec((tm_eff, D), lambda i: (i, 0))],
            out_specs=pl.BlockSpec((tm_eff, D), lambda i: (i, 0)),
        ),
        compiler_params=pltpu.CompilerParams(
            dimension_semantics=("parallel",),
        ),
    )(x_in)

    if n_pad != N:
        out = out[:N]
    return out


if __name__ == "__main__":
    key = jax.random.PRNGKey(0)
    # tfeat-style descriptors: small batch of 128-dim features; N chosen to be
    # NOT a multiple of 8 so the padding/tail path is exercised.
    x = jax.random.normal(key, (100, 128), dtype=jnp.float32)

    out = jax.block_until_ready(l2norm(x))

    # reference check in plain JAX (same math as the PyTorch module)
    ref = x / jnp.sqrt(jnp.sum(x * x, axis=1, keepdims=True) + EPS)
    assert out.shape == x.shape and out.dtype == x.dtype
    assert jnp.allclose(out, ref, atol=1e-6, rtol=1e-6)

    print("KERNEL_OK")
</pallas_src>

<mosaic_0001>
module attributes {stable_mosaic.version = 11 : i64} {
  func.func @l2norm_kernel(%arg0: i32, %arg1: memref<104x128xf32, #tpu.memory_space<vmem>>, %arg2: memref<104x128xf32, #tpu.memory_space<vmem>>) attributes {dimension_semantics = [#tpu.dimension_semantics<parallel>], iteration_bounds = array<i64: 1>, scalar_prefetch = 0 : i64, scratch_operands = 0 : i64, tpu.core_type = #tpu.core_type<tc>, window_params = [{transform_indices = @transform_0, window_bounds = array<i64: 104, 128>}, {transform_indices = @transform_1, window_bounds = array<i64: 104, 128>}]} {
    %c0 = arith.constant 0 : index
    %c0_0 = arith.constant 0 : index
    %0 = vector.load %arg1[%c0, %c0_0] : memref<104x128xf32, #tpu.memory_space<vmem>>, vector<104x128xf32>
    %1 = arith.mulf %0, %0 : vector<104x128xf32>
    %cst = arith.constant dense<0.000000e+00> : vector<104xf32>
    %2 = vector.multi_reduction <add>, %1, %cst [1] : vector<104x128xf32> to vector<104xf32>
    %3 = vector.shape_cast %2 : vector<104xf32> to vector<104x1xf32>
    %cst_1 = arith.constant 1.000000e-10 : f32
    %4 = vector.broadcast %cst_1 : f32 to vector<104x1xf32>
    %5 = arith.addf %3, %4 : vector<104x1xf32>
    %6 = math.sqrt %5 : vector<104x1xf32>
    %cst_2 = arith.constant 1.000000e+00 : f32
    %7 = vector.broadcast %cst_2 : f32 to vector<104x1xf32>
    %8 = arith.divf %7, %6 : vector<104x1xf32>
    %9 = vector.broadcast %8 : vector<104x1xf32> to vector<104x128xf32>
    %10 = arith.mulf %0, %9 : vector<104x128xf32>
    %c0_3 = arith.constant 0 : index
    %c0_4 = arith.constant 0 : index
    %11 = vector.load %arg2[%c0_3, %c0_4] : memref<104x128xf32, #tpu.memory_space<vmem>>, vector<104x128xf32>
    tpu.vector_store %arg2[%c0_3, %c0_4], %10 {strides = array<i32>} : memref<104x128xf32, #tpu.memory_space<vmem>>, vector<104x128xf32>,
    return
  }
  func.func @transform_0(%arg0: i32) -> (i32, i32) {
    %c0_i32 = arith.constant 0 : i32
    %c0_i32_0 = arith.constant 0 : i32
    return %arg0, %c0_i32 : i32, i32
  }
  func.func @transform_1(%arg0: i32) -> (i32, i32) {
    %c0_i32 = arith.constant 0 : i32
    %c0_i32_0 = arith.constant 0 : i32
    return %arg0, %c0_i32 : i32, i32
  }
}

</mosaic_0001>

<llo_original>
// kernel: tpu_custom_call.1
$region0: #{tpu_custom_call.1}
  #allocation0 [shape = 'u32[]', space=smem, size = 0x4, offset = 0x4, fixed_abs, tag = 'smem constant byte address 0x4 - core index']
  #allocation1 [shape = 'u32[144,128]{1,0:T(1,128)}', space=vmem, size = 0x12000, scoped, tag = 'internal scratch']
  %s0 = inlined_call_operand.hbm [shape: f32[104,128], index: 0, kind: input, shape index: {}]
  %s1 = inlined_call_operand.hbm [shape: f32[104,128], index: 1, kind: output, shape index: {}]
  %s2 = sld [smem:[#allocation0]]
  $region18: #{tpu_custom_call.1} parent=0
    _
  %s4 = ssub.s32 1, %s2
  %s5 = scalar_select 0, %s4, %s2
  $region1: #{tpu_custom_call.1} parent=0
    #allocation2 [shape = 'u8[53248]{0}', space=vmem, size = 0xd000, scoped, tag = 'input window, operand 0, single buffered']
    #allocation3 [shape = 's32[1]{0}', space=sflag, size = 0x4, scoped, tag = 'scoped memory for tpu_custom_call.1']
    #allocation4 [shape = 's32[1]{0}', space=sflag, size = 0x4, scoped, tag = 'scoped memory for tpu_custom_call.1']
    #allocation5 [shape = 'u8[53248]{0}', space=vmem, size = 0xd000, scoped, tag = 'output window, operand 0, single buffered']
    %6 = vsyncpa [#allocation3], 0
    %7 = vsyncpa [#allocation4], 0
    // Predicated region
    $region2: #{tpu_custom_call.1} parent=1 // pred_check
      _
    $region3: #{tpu_custom_call.1} parent=1 // pred_check_branch
      %9 = sbr.rel (0) target = $region5
    $region4: #{tpu_custom_call.1} parent=1 // pred_region
      %s11 = ssub.s32 1664, 1664
      %12 = vsyncadd [#allocation3], %s11
      %s13 = sshll.u32 [#allocation2], 4
      %s14 = int_to_ptr.vmem [resolvable:$true] %s13
      %19 = dma.hbm_to_vmem [thread:$0]  %s0, 1664, %s14, [#allocation3], 128, 128, 8
    $region5: #{tpu_custom_call.1} parent=1 // pred_fallthru
      _
    // Predicated region
    $region6: #{tpu_custom_call.1} parent=1 // pred_check
      _
    $region7: #{tpu_custom_call.1} parent=1 // pred_check_branch
      %21 = sbr.rel (0) target = $region9
    $region8: #{tpu_custom_call.1} parent=1 // pred_region
      %22 = dma.done [#allocation3], 1664
    $region9: #{tpu_custom_call.1} parent=1 // pred_fallthru
      _
    %v23 = vld [vmem:[#allocation2] sm:$0xff]
    %v24 = vld [vmem:[#allocation2 + $0x8] sm:$0xff]
    %v25 = vld [vmem:[#allocation2 + $0x10] sm:$0xff]
    %v26 = vld [vmem:[#allocation2 + $0x18] sm:$0xff]
    %v27 = vld [vmem:[#allocation2 + $0x20] sm:$0xff]
    %v28 = vld [vmem:[#allocation2 + $0x28] sm:$0xff]
    %v29 = vld [vmem:[#allocation2 + $0x30] sm:$0xff]
    %v30 = vld [vmem:[#allocation2 + $0x38] sm:$0xff]
    %v31 = vld [vmem:[#allocation2 + $0x40] sm:$0xff]
    %v32 = vld [vmem:[#allocation2 + $0x48] sm:$0xff]
    %v33 = vld [vmem:[#allocation2 + $0x50] sm:$0xff]
    %v34 = vld [vmem:[#allocation2 + $0x58] sm:$0xff]
    %v35 = vld [vmem:[#allocation2 + $0x60] sm:$0xff]
    %v36 = vmul.f32 %v23, %v23
    %v37 = vmul.f32 %v24, %v24
    %v38 = vmul.f32 %v25, %v25
    %v39 = vmul.f32 %v26, %v26
    %v40 = vmul.f32 %v27, %v27
    %v41 = vmul.f32 %v28, %v28
    %v42 = vmul.f32 %v29, %v29
    %v43 = vmul.f32 %v30, %v30
    %v44 = vmul.f32 %v31, %v31
    %v45 = vmul.f32 %v32, %v32
    %v46 = vmul.f32 %v33, %v33
    %v47 = vmul.f32 %v34, %v34
    %v48 = vmul.f32 %v35, %v35
    %49 = vadd.xlane.f32.xlu0 %v36
    %v50 = vpop.xlane.xlu0 %49
    %51 = vadd.xlane.f32.xlu0 %v37
    %v52 = vpop.xlane.xlu0 %51
    %53 = vadd.xlane.f32.xlu0 %v38
    %v54 = vpop.xlane.xlu0 %53
    %55 = vadd.xlane.f32.xlu0 %v39
    %v56 = vpop.xlane.xlu0 %55
    %57 = vadd.xlane.f32.xlu0 %v40
    %v58 = vpop.xlane.xlu0 %57
    %59 = vadd.xlane.f32.xlu0 %v41
    %v60 = vpop.xlane.xlu0 %59
    %61 = vadd.xlane.f32.xlu0 %v42
    %v62 = vpop.xlane.xlu0 %61
    %63 = vadd.xlane.f32.xlu0 %v43
    %v64 = vpop.xlane.xlu0 %63
    %65 = vadd.xlane.f32.xlu0 %v44
    %v66 = vpop.xlane.xlu0 %65
    %67 = vadd.xlane.f32.xlu0 %v45
    %v68 = vpop.xlane.xlu0 %67
    %69 = vadd.xlane.f32.xlu0 %v46
    %v70 = vpop.xlane.xlu0 %69
    %71 = vadd.xlane.f32.xlu0 %v47
    %v72 = vpop.xlane.xlu0 %71
    %73 = vadd.xlane.f32.xlu0 %v48
    %v74 = vpop.xlane.xlu0 %73
    %v75 = vadd.f32 %v50, 1e-10
    %v76 = vadd.f32 %v52, 1e-10
    %v77 = vadd.f32 %v54, 1e-10
    %v78 = vadd.f32 %v56, 1e-10
    %v79 = vadd.f32 %v58, 1e-10
    %v80 = vadd.f32 %v60, 1e-10
    %v81 = vadd.f32 %v62, 1e-10
    %v82 = vadd.f32 %v64, 1e-10
    %v83 = vadd.f32 %v66, 1e-10
    %v84 = vadd.f32 %v68, 1e-10
    %v85 = vadd.f32 %v70, 1e-10
    %v86 = vadd.f32 %v72, 1e-10
    %v87 = vadd.f32 %v74, 1e-10
    %v88 = vrsqrt.pop %v75
    %v89 = vmul.f32 %v75, %v88
    %vm90 = vcmp.eq.f32.partialorder %v75, inf
    %v91 = vsel %vm90, %v75, %v89
    %vm92 = vcmp.eq.f32.partialorder %v75, 0.0
    %v93 = vand.u32 %v75, 2147483648
    %v94 = vsel %vm92, %v93, %v91
    %v95 = vrsqrt.pop %v76
    %v96 = vmul.f32 %v76, %v95
    %vm97 = vcmp.eq.f32.partialorder %v76, inf
    %v98 = vsel %vm97, %v76, %v96
    %vm99 = vcmp.eq.f32.partialorder %v76, 0.0
    %v100 = vand.u32 %v76, 2147483648
    %v101 = vsel %vm99, %v100, %v98
    %v102 = vrsqrt.pop %v77
    %v103 = vmul.f32 %v77, %v102
    %vm104 = vcmp.eq.f32.partialorder %v77, inf
    %v105 = vsel %vm104, %v77, %v103
    %vm106 = vcmp.eq.f32.partialorder %v77, 0.0
    %v107 = vand.u32 %v77, 2147483648
    %v108 = vsel %vm106, %v107, %v105
    %v109 = vrsqrt.pop %v78
    %v110 = vmul.f32 %v78, %v109
    %vm111 = vcmp.eq.f32.partialorder %v78, inf
    %v112 = vsel %vm111, %v78, %v110
    %vm113 = vcmp.eq.f32.partialorder %v78, 0.0
    %v114 = vand.u32 %v78, 2147483648
    %v115 = vsel %vm113, %v114, %v112
    %v116 = vrsqrt.pop %v79
    %v117 = vmul.f32 %v79, %v116
    %vm118 = vcmp.eq.f32.partialorder %v79, inf
    %v119 = vsel %vm118, %v79, %v117
    %vm120 = vcmp.eq.f32.partialorder %v79, 0.0
    %v121 = vand.u32 %v79, 2147483648
    %v122 = vsel %vm120, %v121, %v119
    %v123 = vrsqrt.pop %v80
    %v124 = vmul.f32 %v80, %v123
    %vm125 = vcmp.eq.f32.partialorder %v80, inf
    %v126 = vsel %vm125, %v80, %v124
    %vm127 = vcmp.eq.f32.partialorder %v80, 0.0
    %v128 = vand.u32 %v80, 2147483648
    %v129 = vsel %vm127, %v128, %v126
    %v130 = vrsqrt.pop %v81
    %v131 = vmul.f32 %v81, %v130
    %vm132 = vcmp.eq.f32.partialorder %v81, inf
    %v133 = vsel %vm132, %v81, %v131
    %vm134 = vcmp.eq.f32.partialorder %v81, 0.0
    %v135 = vand.u32 %v81, 2147483648
    %v136 = vsel %vm134, %v135, %v133
    %v137 = vrsqrt.pop %v82
    %v138 = vmul.f32 %v82, %v137
    %vm139 = vcmp.eq.f32.partialorder %v82, inf
    %v140 = vsel %vm139, %v82, %v138
    %vm141 = vcmp.eq.f32.partialorder %v82, 0.0
    %v142 = vand.u32 %v82, 2147483648
    %v143 = vsel %vm141, %v142, %v140
    %v144 = vrsqrt.pop %v83
    %v145 = vmul.f32 %v83, %v144
    %vm146 = vcmp.eq.f32.partialorder %v83, inf
    %v147 = vsel %vm146, %v83, %v145
    %vm148 = vcmp.eq.f32.partialorder %v83, 0.0
    %v149 = vand.u32 %v83, 2147483648
    %v150 = vsel %vm148, %v149, %v147
    %v151 = vrsqrt.pop %v84
    %v152 = vmul.f32 %v84, %v151
    %vm153 = vcmp.eq.f32.partialorder %v84, inf
    %v154 = vsel %vm153, %v84, %v152
    %vm155 = vcmp.eq.f32.partialorder %v84, 0.0
    %v156 = vand.u32 %v84, 2147483648
    %v157 = vsel %vm155, %v156, %v154
    %v158 = vrsqrt.pop %v85
    %v159 = vmul.f32 %v85, %v158
    %vm160 = vcmp.eq.f32.partialorder %v85, inf
    %v161 = vsel %vm160, %v85, %v159
    %vm162 = vcmp.eq.f32.partialorder %v85, 0.0
    %v163 = vand.u32 %v85, 2147483648
    %v164 = vsel %vm162, %v163, %v161
    %v165 = vrsqrt.pop %v86
    %v166 = vmul.f32 %v86, %v165
    %vm167 = vcmp.eq.f32.partialorder %v86, inf
    %v168 = vsel %vm167, %v86, %v166
    %vm169 = vcmp.eq.f32.partialorder %v86, 0.0
    %v170 = vand.u32 %v86, 2147483648
    %v171 = vsel %vm169, %v170, %v168
    %v172 = vrsqrt.pop %v87
    %v173 = vmul.f32 %v87, %v172
    %vm174 = vcmp.eq.f32.partialorder %v87, inf
    %v175 = vsel %vm174, %v87, %v173
    %vm176 = vcmp.eq.f32.partialorder %v87, 0.0
    %v177 = vand.u32 %v87, 2147483648
    %v178 = vsel %vm176, %v177, %v175
    %v179 = vrcp.pop %v94
    %v180 = vmul.f32 1.0, %v179
    %v181 = vrcp.pop %v101
    %v182 = vmul.f32 1.0, %v181
    %v183 = vrcp.pop %v108
    %v184 = vmul.f32 1.0, %v183
    %v185 = vrcp.pop %v115
    %v186 = vmul.f32 1.0, %v185
    %v187 = vrcp.pop %v122
    %v188 = vmul.f32 1.0, %v187
    %v189 = vrcp.pop %v129
    %v190 = vmul.f32 1.0, %v189
    %v191 = vrcp.pop %v136
    %v192 = vmul.f32 1.0, %v191
    %v193 = vrcp.pop %v143
    %v194 = vmul.f32 1.0, %v193
    %v195 = vrcp.pop %v150
    %v196 = vmul.f32 1.0, %v195
    %v197 = vrcp.pop %v157
    %v198 = vmul.f32 1.0, %v197
    %v199 = vrcp.pop %v164
    %v200 = vmul.f32 1.0, %v199
    %v201 = vrcp.pop %v171
    %v202 = vmul.f32 1.0, %v201
    %v203 = vrcp.pop %v178
    %v204 = vmul.f32 1.0, %v203
    %v205 = vmul.f32 %v23, %v180
    %v206 = vmul.f32 %v24, %v182
    %v207 = vmul.f32 %v25, %v184
    %v208 = vmul.f32 %v26, %v186
    %v209 = vmul.f32 %v27, %v188
    %v210 = vmul.f32 %v28, %v190
    %v211 = vmul.f32 %v29, %v192
    %v212 = vmul.f32 %v30, %v194
    %v213 = vmul.f32 %v31, %v196
    %v214 = vmul.f32 %v32, %v198
    %v215 = vmul.f32 %v33, %v200
    %v216 = vmul.f32 %v34, %v202
    %v217 = vmul.f32 %v35, %v204
    %218 = vst [vmem:[#allocation5] sm:$0xff] %v205
    %219 = vst [vmem:[#allocation5 + $0x8] sm:$0xff] %v206
    %220 = vst [vmem:[#allocation5 + $0x10] sm:$0xff] %v207
    %221 = vst [vmem:[#allocation5 + $0x18] sm:$0xff] %v208
    %222 = vst [vmem:[#allocation5 + $0x20] sm:$0xff] %v209
    %223 = vst [vmem:[#allocation5 + $0x28] sm:$0xff] %v210
    %224 = vst [vmem:[#allocation5 + $0x30] sm:$0xff] %v211
    %225 = vst [vmem:[#allocation5 + $0x38] sm:$0xff] %v212
    %226 = vst [vmem:[#allocation5 + $0x40] sm:$0xff] %v213
    %227 = vst [vmem:[#allocation5 + $0x48] sm:$0xff] %v214
    %228 = vst [vmem:[#allocation5 + $0x50] sm:$0xff] %v215
    %229 = vst [vmem:[#allocation5 + $0x58] sm:$0xff] %v216
    %230 = vst [vmem:[#allocation5 + $0x60] sm:$0xff] %v217
    // Predicated region
    $region10: #{tpu_custom_call.1} parent=1 // pred_check
      _
    $region11: #{tpu_custom_call.1} parent=1 // pred_check_branch
      %232 = sbr.rel (0) target = $region13
    $region12: #{tpu_custom_call.1} parent=1 // pred_region
      %s234 = ssub.s32 1664, 1664
      %235 = vsyncadd [#allocation4], %s234
      %s236 = sshll.u32 [#allocation5], 4
      %s237 = int_to_ptr.vmem [resolvable:$true] %s236
      %242 = dma.vmem_to_hbm [thread:$0]  %s237, 1664, %s1, [#allocation4], 128, 128, 8
    $region13: #{tpu_custom_call.1} parent=1 // pred_fallthru
      _
    // Predicated region
    $region14: #{tpu_custom_call.1} parent=1 // pred_check
      _
    $region15: #{tpu_custom_call.1} parent=1 // pred_check_branch
      %244 = sbr.rel (0) target = $region17
    $region16: #{tpu_custom_call.1} parent=1 // pred_region
      %245 = dma.done [#allocation4], 1664
    $region17: #{tpu_custom_call.1} parent=1 // pred_fallthru
      _
    %246 = vsyncpa [#allocation3], 1
    %247 = vsyncpa [#allocation4], 1

</llo_original>
